<compile_context>
chip_gen: v6e
topology: v6e:2x2x1
jax: 0.10.0
libtpu: 0.0.40
codegen_flags: <defaults>
</compile_context>

<pallas_src>
import functools

import jax
import jax.numpy as jnp
from jax.experimental import pallas as pl
from jax.experimental.pallas import tpu as pltpu

_LANE = 128
_SUBLANE = 8


def _round_up(n, m):
    return (n + m - 1) // m * m


def _maxout_kernel(x_ref, w_ref, b_ref, o_ref, *, pool, tn, compute_dtype):
    """One (N-tile, M-tile) of Maxout.

    x_ref: (TM, d_in)         input dtype (cast to compute dtype in-kernel)
    w_ref: (d_in, pool*TN)    compute dtype; pool groups in adjacent 128-lane groups
    b_ref: (1, pool*TN)       float32
    o_ref: (TM, TN)           output dtype
    """
    x = x_ref[...].astype(compute_dtype)
    # One wide MXU dot over all pool groups of this N tile (fills the 256-wide
    # MXU on v6e/v7x even when TN == 128); f32 accumulation + f32 bias add.
    y = jnp.dot(x, w_ref[...], preferred_element_type=jnp.float32) + b_ref[...]
    # Pool-max: static lane-aligned slices (multiples of 128) folded on the VPU.
    m = y[:, :tn]
    for p in range(1, pool):
        m = jnp.maximum(m, y[:, p * tn:(p + 1) * tn])
    o_ref[...] = m.astype(o_ref.dtype)


def prepare_maxout_params(w_pt, b_pt, d_out, pool,
                          compute_dtype=jnp.bfloat16, tn=128):
    """Hoisted (call once per module): PyTorch Linear params -> kernel layout.

    w_pt: (d_out*pool, d_in) PyTorch Linear weight; b_pt: (d_out*pool,).
    PyTorch's out.view(..., d_out, pool).max(-1) means Linear column
    j = o*pool + p feeds output o through pool group p.

    Returns:
      w_k: (d_in, n_tiles*pool*tn) compute_dtype — for each N tile of `tn`
           output columns, its `pool` groups sit in adjacent 128-lane groups.
      b_k: (1,    n_tiles*pool*tn) float32, same layout.
    """
    d_in = w_pt.shape[1]
    tn = _round_up(tn, _LANE)
    n_pad = _round_up(d_out, tn)
    n_tiles = n_pad // tn

    # (d_out*pool, d_in) -> (d_out, pool, d_in) -> (pool, d_in, d_out), pad d_out.
    w = jnp.transpose(w_pt.reshape(d_out, pool, d_in), (1, 2, 0))
    w = jnp.pad(w, ((0, 0), (0, 0), (0, n_pad - d_out)))
    # Regroup so each N tile's pool groups are contiguous lane groups:
    # (pool, d_in, n_tiles, tn) -> (d_in, n_tiles, pool, tn) -> (d_in, n_tiles*pool*tn)
    w = w.reshape(pool, d_in, n_tiles, tn).transpose(1, 2, 0, 3)
    w_k = w.reshape(d_in, n_tiles * pool * tn).astype(compute_dtype)

    b = jnp.transpose(b_pt.reshape(d_out, pool), (1, 0))          # (pool, d_out)
    b = jnp.pad(b, ((0, 0), (0, n_pad - d_out)))
    b = b.reshape(pool, n_tiles, tn).transpose(1, 0, 2)            # (n_tiles, pool, tn)
    b_k = b.reshape(1, n_tiles * pool * tn).astype(jnp.float32)
    return w_k, b_k


@functools.partial(jax.jit,
                   static_argnames=("d_out", "pool", "tn", "tm", "out_dtype"))
def maxout_forward(x, w_k, b_k, *, d_out, pool, tn=128, tm=512, out_dtype=None):
    """x: (..., d_in) -> (..., d_out) with PyTorch Maxout semantics."""
    lead_shape = x.shape[:-1]
    d_in = x.shape[-1]
    m_rows = 1
    for s in lead_shape:
        m_rows *= s

    tn = _round_up(tn, _LANE)
    n_total = w_k.shape[1]
    assert w_k.shape[0] == d_in and n_total % (pool * tn) == 0
    n_tiles = n_total // (pool * tn)
    n_pad = n_tiles * tn
    compute_dtype = w_k.dtype

    if out_dtype is None:
        out_dtype = x.dtype if jnp.issubdtype(x.dtype, jnp.floating) else jnp.float32
    out_dtype = jnp.dtype(out_dtype)

    # Row tile: multiple of 8 sublanes, capped by the row count.
    tm = min(tm, _round_up(m_rows, _SUBLANE))
    # v7x megacore: if the grid would otherwise be a single step, split M in
    # two so both TensorCores get work (harmless on 1-TC v5e/v6e).
    if n_tiles == 1 and pl.cdiv(m_rows, tm) == 1 and m_rows >= 2 * _SUBLANE:
        tm = _round_up(pl.cdiv(m_rows, 2), _SUBLANE)
    m_tiles = pl.cdiv(m_rows, tm)

    # No wrapper-side pad/cast: Pallas handles the partial last M block and the
    # dtype cast happens in-kernel.
    x2d = x.reshape(m_rows, d_in)

    kernel = functools.partial(_maxout_kernel, pool=pool, tn=tn,
                               compute_dtype=compute_dtype)

    flops = 2 * m_rows * d_in * n_total
    bytes_accessed = (x2d.size * x2d.dtype.itemsize
                      + w_k.size * w_k.dtype.itemsize
                      + b_k.size * b_k.dtype.itemsize
                      + m_rows * n_pad * out_dtype.itemsize)

    # Per-step VMEM footprint (default pipeline double-buffers every operand).
    block_bytes = (2 * tm * d_in * x.dtype.itemsize
                   + 2 * d_in * pool * tn * jnp.dtype(compute_dtype).itemsize
                   + 2 * pool * tn * 4
                   + 2 * tm * tn * out_dtype.itemsize)
    cp_kwargs = dict(dimension_semantics=("parallel", "parallel"))
    if block_bytes > (12 << 20):  # v5e's 16 MiB default scoped limit is the floor
        cp_kwargs["vmem_limit_bytes"] = int(min(2 * block_bytes, 48 << 20))

    out2d = pl.pallas_call(
        kernel,
        out_shape=jax.ShapeDtypeStruct((m_rows, n_pad), out_dtype),
        # N outer / M inner: the weight tile is DMA'd once per N tile and stays
        # resident in VMEM while the M axis streams through.
        grid=(n_tiles, m_tiles),
        in_specs=[
            pl.BlockSpec((tm, d_in), lambda j, i: (i, 0)),          # activations
            pl.BlockSpec((d_in, pool * tn), lambda j, i: (0, j)),   # weights
            pl.BlockSpec((1, pool * tn), lambda j, i: (0, j)),      # bias (f32)
        ],
        out_specs=pl.BlockSpec((tm, tn), lambda j, i: (i, j)),
        compiler_params=pltpu.CompilerParams(**cp_kwargs),
        cost_estimate=pl.CostEstimate(flops=flops, transcendentals=0,
                                      bytes_accessed=bytes_accessed),
    )(x2d, w_k, b_k)

    # Lane slice only when d_out is not a multiple of the lane tile (padded
    # columns are zero and dropped here). No row padding to strip.
    if d_out != n_pad:
        out2d = out2d[:, :d_out]
    return out2d.reshape(*lead_shape, d_out)


if __name__ == "__main__":
    # Maxout(dim_in=32, dim_out=16, pooling_size=4); input (batch=2, seq=8, dim_in=32)
    d_in, d_out, pool = 32, 16, 4
    key = jax.random.PRNGKey(0)
    kx, kw, kb = jax.random.split(key, 3)

    x = jax.random.normal(kx, (2, 8, d_in), dtype=jnp.float32)
    # Deterministic synthetic Linear params (PyTorch layout: weight [out, in], bias [out]).
    w_pt = jax.random.normal(kw, (d_out * pool, d_in), dtype=jnp.float32) * 0.1
    b_pt = jax.random.normal(kb, (d_out * pool,), dtype=jnp.float32) * 0.1

    # Reference (mirrors PyTorch Linear -> view(..., d_out, pool) -> max(-1)).
    ref = (x @ w_pt.T + b_pt).reshape(2, 8, d_out, pool).max(axis=-1)

    # f32 MXU path: exact agreement with the fp32 reference.
    w_k32, b_k32 = prepare_maxout_params(w_pt, b_pt, d_out, pool,
                                         compute_dtype=jnp.float32)
    out_f32 = maxout_forward(x, w_k32, b_k32, d_out=d_out, pool=pool)
    jax.block_until_ready(out_f32)
    assert out_f32.shape == (2, 8, d_out)
    assert jnp.allclose(out_f32, ref, atol=1e-5, rtol=1e-5)

    # bf16 MXU path (default on v5e/v6e/v7x): f32 accumulation, bf16 output
    # (halves output HBM traffic). Note: bf16 quantization can flip which pool
    # group wins near ties vs the fp32 reference — expected behavior.
    w_k16, b_k16 = prepare_maxout_params(w_pt, b_pt, d_out, pool,
                                         compute_dtype=jnp.bfloat16)
    out_bf16 = maxout_forward(x, w_k16, b_k16, d_out=d_out, pool=pool,
                              out_dtype=jnp.bfloat16)
    jax.block_until_ready(out_bf16)
    assert out_bf16.shape == (2, 8, d_out)
    assert out_bf16.dtype == jnp.bfloat16
    assert jnp.allclose(out_bf16.astype(jnp.float32), ref, atol=5e-2, rtol=5e-2)

    print("KERNEL_OK")
</pallas_src>

<mosaic_0001>
module attributes {stable_mosaic.version = 11 : i64} {
  func.func @_maxout_kernel(%arg0: i32, %arg1: i32, %arg2: memref<8x32xf32, #tpu.memory_space<vmem>>, %arg3: memref<32x512xf32, #tpu.memory_space<vmem>>, %arg4: memref<1x512xf32, #tpu.memory_space<vmem>>, %arg5: memref<8x128xf32, #tpu.memory_space<vmem>>) attributes {dimension_semantics = [#tpu.dimension_semantics<parallel>, #tpu.dimension_semantics<parallel>], iteration_bounds = array<i64: 1, 2>, scalar_prefetch = 0 : i64, scratch_operands = 0 : i64, tpu.core_type = #tpu.core_type<tc>, window_params = [{transform_indices = @transform_0, window_bounds = array<i64: 8, 32>}, {transform_indices = @transform_1, window_bounds = array<i64: 32, 512>}, {transform_indices = @transform_2, window_bounds = array<i64: 1, 512>}, {transform_indices = @transform_3, window_bounds = array<i64: 8, 128>}]} {
    %c0 = arith.constant 0 : index
    %c0_0 = arith.constant 0 : index
    %0 = vector.load %arg2[%c0, %c0_0] : memref<8x32xf32, #tpu.memory_space<vmem>>, vector<8x32xf32>
    %c0_1 = arith.constant 0 : index
    %c0_2 = arith.constant 0 : index
    %1 = vector.load %arg3[%c0_1, %c0_2] : memref<32x512xf32, #tpu.memory_space<vmem>>, vector<32x512xf32>
    %cst = arith.constant dense<0.000000e+00> : vector<8x512xf32>
    %2 = tpu.matmul %0, %1, %cst {dimension_numbers = #tpu.dot_dimension_numbers<[1], [0], [0], [1], [0, 0, 1, 1], [], []>} : vector<8x32xf32>, vector<32x512xf32>, vector<8x512xf32> -> vector<8x512xf32>
    %c0_3 = arith.constant 0 : index
    %c0_4 = arith.constant 0 : index
    %3 = vector.load %arg4[%c0_3, %c0_4] : memref<1x512xf32, #tpu.memory_space<vmem>>, vector<1x512xf32>
    %4 = vector.broadcast %3 : vector<1x512xf32> to vector<8x512xf32>
    %5 = arith.addf %2, %4 : vector<8x512xf32>
    %6 = vector.extract_strided_slice %5 {offsets = [0, 0], sizes = [8, 128], strides = [1, 1]} : vector<8x512xf32> to vector<8x128xf32>
    %7 = vector.extract_strided_slice %5 {offsets = [0, 128], sizes = [8, 128], strides = [1, 1]} : vector<8x512xf32> to vector<8x128xf32>
    %8 = arith.maximumf %6, %7 : vector<8x128xf32>
    %9 = vector.extract_strided_slice %5 {offsets = [0, 256], sizes = [8, 128], strides = [1, 1]} : vector<8x512xf32> to vector<8x128xf32>
    %10 = arith.maximumf %8, %9 : vector<8x128xf32>
    %11 = vector.extract_strided_slice %5 {offsets = [0, 384], sizes = [8, 128], strides = [1, 1]} : vector<8x512xf32> to vector<8x128xf32>
    %12 = arith.maximumf %10, %11 : vector<8x128xf32>
    %c0_5 = arith.constant 0 : index
    %c0_6 = arith.constant 0 : index
    %13 = vector.load %arg5[%c0_5, %c0_6] : memref<8x128xf32, #tpu.memory_space<vmem>>, vector<8x128xf32>
    tpu.vector_store %arg5[%c0_5, %c0_6], %12 {strides = array<i32>} : memref<8x128xf32, #tpu.memory_space<vmem>>, vector<8x128xf32>,
    return
  }
  func.func @transform_0(%arg0: i32, %arg1: i32) -> (i32, i32) {
    %c0_i32 = arith.constant 0 : i32
    %c0_i32_0 = arith.constant 0 : i32
    return %arg1, %c0_i32 : i32, i32
  }
  func.func @transform_1(%arg0: i32, %arg1: i32) -> (i32, i32) {
    %c0_i32 = arith.constant 0 : i32
    %c0_i32_0 = arith.constant 0 : i32
    return %c0_i32, %arg0 : i32, i32
  }
  func.func @transform_2(%arg0: i32, %arg1: i32) -> (i32, i32) {
    %c0_i32 = arith.constant 0 : i32
    %c0_i32_0 = arith.constant 0 : i32
    return %c0_i32, %arg0 : i32, i32
  }
  func.func @transform_3(%arg0: i32, %arg1: i32) -> (i32, i32) {
    %c0_i32 = arith.constant 0 : i32
    return %arg1, %arg0 : i32, i32
  }
}

</mosaic_0001>

<llo_original>
// kernel: maxout_forward.1
$region0: #{maxout_forward.1}
  #allocation0 [shape = 'u32[]', space=smem, size = 0x4, offset = 0x4, fixed_abs, tag = 'smem constant byte address 0x4 - core index']
  #allocation1 [shape = 'u32[144,128]{1,0:T(1,128)}', space=vmem, size = 0x12000, scoped, tag = 'internal scratch']
  %s0 = inlined_call_operand.hbm [shape: f32[16,32], index: 0, kind: input, shape index: {}]
  %s1 = inlined_call_operand.hbm [shape: f32[32,512], index: 1, kind: input, shape index: {}]
  %s2 = inlined_call_operand.vmem [shape: f32[1,512], index: 2, kind: input, shape index: {}]
  %s3 = inlined_call_operand.vmem [shape: f32[16,128], index: 3, kind: output, shape index: {}]
  %s4 = sld [smem:[#allocation0]]
  $region53: #{maxout_forward.1} parent=0
    _
  %s6 = ssub.s32 1, %s4
  %s7 = scalar_select 0, %s6, %s4
  $region1: #{maxout_forward.1} parent=0
    #allocation2 [shape = 'u8[8192]{0}', space=vmem, size = 0x2000, scoped, tag = 'input window, operand 0']
    #allocation3 [shape = 's32[2]{0}', space=sflag, size = 0x8, scoped, tag = 'scoped memory for maxout_forward.1']
    #allocation4 [shape = 'u8[65536]{0}', space=vmem, size = 0x10000, scoped, tag = 'input window, operand 1, single buffered']
    #allocation5 [shape = 's32[1]{0}', space=sflag, size = 0x4, scoped, tag = 'scoped memory for maxout_forward.1']
    %8 = vsyncpa [#allocation3], 0
    %s9 = scalar_lea.sflag [#allocation3], 1
    %10 = vsyncpa %s9, 0
    %11 = vsyncpa [#allocation5], 0
    loop: start=0, step=1, limit=4
    $region2: #{maxout_forward.1} parent=1 // loop_pre_header
      _
    $region3: #{maxout_forward.1} parent=1 // loop_header
      %s13 = sphi 0, %s17
      %p14 = scmp.ge.s32.totalorder %s13, 4
      %s20 = sphi 0, %s32
      %s21 = sphi 0, %s28
      %s22 = sphi 0, %s20
      %s23 = sphi 0, %s21
      %s24 = sphi 0, %s22
      %s25 = sphi 0, %s23
      %s35 = sphi 0, %s37
      %s38 = sphi 0, %s35
      %s39 = sphi 0, %s38
      %s55 = sphi 0, %s39
      %s61 = sphi 0, %s63
      %s64 = sphi 0, %s61
      %s65 = sphi 0, %s64
      %s81 = sphi 0, %s65
      %s87 = sphi 0, %s89
      %s90 = sphi 0, %s87
      %s91 = sphi 0, %s90
      %s107 = sphi 0, %s91
      %s115 = sphi 0, %s117
      %s118 = sphi 0, %s115
      %s119 = sphi 0, %s118
      %s135 = sphi 0, %s119
    $region4: #{maxout_forward.1} parent=1 // loop_header_branch
      %16 = sbr.rel (%p14) target = $region8
    $region5: #{maxout_forward.1} parent=1 // loop_body
      %s18 = ssub.s32 %s13, 1
      %s19 = ssub.s32 %s13, 2
      %s26 = sadd.s32 1, %s21
      %p27 = scmp.ge.s32.totalorder %s26, 2
      %s28 = scalar_select %p27, 0, %s26
      %s29 = sadd.s32 1, %s20
      %s30 = scalar_select %p27, %s29, %s20
      %p31 = scmp.ge.s32.totalorder %s30, 1
      %s32 = scalar_select %p31, 0, %s30
      %s33 = ssub.s32 %s21, %s28
      %p34 = scmp.eq.s32.totalorder %s33, 0
      %s36 = sadd.s32 %s35, 1
      %s37 = scalar_select %p34, %s35, %s36
      %p40 = pneg %p34
      %p41 = scmp.eq.s32.totalorder %s13, 1
      %p42 = por %p40, %p41
      %p43 = scmp.ne.s32.totalorder %s35, %s38
      %p44 = scmp.eq.s32.totalorder %s13, 0
      %p45 = por %p43, %p44
      %p46 = scmp.ne.s32.totalorder %s35, %s38
      %p47 = scmp.eq.s32.totalorder %s18, 1
      %p48 = por %p46, %p47
      %p49 = scmp.ne.s32.totalorder %s38, %s39
      %p50 = scmp.eq.s32.totalorder %s18, 0
      %p51 = por %p49, %p50
      %p52 = scmp.ne.s32.totalorder %s38, %s39
      %p53 = scmp.eq.s32.totalorder %s19, 1
      %p54 = por %p52, %p53
      %p56 = scmp.ne.s32.totalorder %s39, %s55
      %p57 = scmp.eq.s32.totalorder %s19, 0
      %p58 = por %p56, %p57
      %s59 = ssub.s32 %s20, %s32
      %p60 = scmp.eq.s32.totalorder %s59, 0
      %s62 = sadd.s32 %s61, 1
      %s63 = scalar_select %p60, %s61, %s62
      %p66 = pneg %p60
      %p67 = scmp.eq.s32.totalorder %s13, 1
      %p68 = por %p66, %p67
      %p69 = scmp.ne.s32.totalorder %s61, %s64
      %p70 = scmp.eq.s32.totalorder %s13, 0
      %p71 = por %p69, %p70
      %p72 = scmp.ne.s32.totalorder %s61, %s64
      %p73 = scmp.eq.s32.totalorder %s18, 1
      %p74 = por %p72, %p73
      %p75 = scmp.ne.s32.totalorder %s64, %s65
      %p76 = scmp.eq.s32.totalorder %s18, 0
      %p77 = por %p75, %p76
      %p78 = scmp.ne.s32.totalorder %s64, %s65
      %p79 = scmp.eq.s32.totalorder %s19, 1
      %p80 = por %p78, %p79
      %p82 = scmp.ne.s32.totalorder %s65, %s81
      %p83 = scmp.eq.s32.totalorder %s19, 0
      %p84 = por %p82, %p83
      %s85 = ssub.s32 %s20, %s32
      %p86 = scmp.eq.s32.totalorder %s85, 0
      %s88 = sadd.s32 %s87, 1
      %s89 = scalar_select %p86, %s87, %s88
      %p92 = pneg %p86
      %p93 = scmp.eq.s32.totalorder %s13, 1
      %p94 = por %p92, %p93
      %p95 = scmp.ne.s32.totalorder %s87, %s90
      %p96 = scmp.eq.s32.totalorder %s13, 0
      %p97 = por %p95, %p96
      %p98 = scmp.ne.s32.totalorder %s87, %s90
      %p99 = scmp.eq.s32.totalorder %s18, 1
      %p100 = por %p98, %p99
      %p101 = scmp.ne.s32.totalorder %s90, %s91
      %p102 = scmp.eq.s32.totalorder %s18, 0
      %p103 = por %p101, %p102
      %p104 = scmp.ne.s32.totalorder %s90, %s91
      %p105 = scmp.eq.s32.totalorder %s19, 1
      %p106 = por %p104, %p105
      %p108 = scmp.ne.s32.totalorder %s91, %s107
      %p109 = scmp.eq.s32.totalorder %s19, 0
      %p110 = por %p108, %p109
      %s111 = ssub.s32 %s21, %s28
      %s112 = ssub.s32 %s20, %s32
      %s113 = sor.u32 %s111, %s112
      %p114 = scmp.eq.s32.totalorder %s113, 0
      %s116 = sadd.s32 %s115, 1
      %s117 = scalar_select %p114, %s115, %s116
      %p120 = pneg %p114
      %p121 = scmp.eq.s32.totalorder %s13, 1
      %p122 = por %p120, %p121
      %p123 = scmp.ne.s32.totalorder %s115, %s118
      %p124 = scmp.eq.s32.totalorder %s13, 0
      %p125 = por %p123, %p124
      %p126 = scmp.ne.s32.totalorder %s115, %s118
      %p127 = scmp.eq.s32.totalorder %s18, 1
      %p128 = por %p126, %p127
      %p129 = scmp.ne.s32.totalorder %s118, %s119
      %p130 = scmp.eq.s32.totalorder %s18, 0
      %p131 = por %p129, %p130
      %p132 = scmp.ne.s32.totalorder %s118, %s119
      %p133 = scmp.eq.s32.totalorder %s19, 1
      %p134 = por %p132, %p133
      %p136 = scmp.ne.s32.totalorder %s119, %s135
      %p137 = scmp.eq.s32.totalorder %s19, 0
      %p138 = por %p136, %p137
      %p139 = scmp.le.s32.totalorder 1, %s13
      %p140 = scmp.lt.s32.totalorder %s13, 3
      %p141 = pnand %p139, %p140
      %p142 = pneg %p141
      // Predicated region
      $region9: #{maxout_forward.1} parent=5 // pred_check
        _
      $region10: #{maxout_forward.1} parent=5 // pred_check_branch
        %144 = sbr.rel (%p141) target = $region12
      $region11: #{maxout_forward.1} parent=5 // pred_region
        %s145 = ssub.s32 %s13, 1
        // Predicated region
        $region13: #{maxout_forward.1} parent=11 // pred_check
          %p146 = pneg %p77
        $region14: #{maxout_forward.1} parent=11 // pred_check_branch
          %148 = sbr.rel (%p146) target = $region16
        $region15: #{maxout_forward.1} parent=11 // pred_region
          %s149 = smul.u32 4, %s22
          %s151 = ssub.s32 2048, 2048
          %152 = vsyncadd [#allocation5], %s151
          %s153 = smul.addr %s149, 128
          %s154 = scalar_lea.hbm %s1, %s153
          %s155 = sshll.u32 [#allocation4], 4
          %s156 = int_to_ptr.vmem [resolvable:$true] %s155
          %161 = dma.hbm_to_vmem [thread:$0]  %s154, 2048, %s156, [#allocation5], 512, 512, 32
        $region16: #{maxout_forward.1} parent=11 // pred_fallthru
          _
        // Predicated region
        $region17: #{maxout_forward.1} parent=11 // pred_check
          %p162 = pneg %p103
        $region18: #{maxout_forward.1} parent=11 // pred_check_branch
          %164 = sbr.rel (%p162) target = $region20
        $region19: #{maxout_forward.1} parent=11 // pred_region
          %s165 = smul.u32 4, %s22
          %p166 = scmp.lt.s32.totalorder %s165, 3
          %s167 = scalar_select %p166, %s165, 3
          %s168 = scalar_lea.vmem %s2, %s167
          %s169 = smul.u32 4, %s22
        $region20: #{maxout_forward.1} parent=11 // pred_fallthru
          _
      $region12: #{maxout_forward.1} parent=5 // pred_fallthru
        _
      %p170 = scmp.lt.s32.totalorder %s13, 2
      // Predicated region
      $region21: #{maxout_forward.1} parent=5 // pred_check
        %p171 = pneg %p170
      $region22: #{maxout_forward.1} parent=5 // pred_check_branch
        %173 = sbr.rel (%p171) target = $region24
      $region23: #{maxout_forward.1} parent=5 // pred_region
        // Predicated region
        $region25: #{maxout_forward.1} parent=23 // pred_check
          %p174 = pneg %p45
        $region26: #{maxout_forward.1} parent=23 // pred_check_branch
          %176 = sbr.rel (%p174) target = $region28
        $region27: #{maxout_forward.1} parent=23 // pred_region
          %s177 = sand.u32 %s35, 1
          %s178 = scalar_lea.sflag [#allocation3], %s177
          %s179 = sand.u32 %s35, 1
          %s180 = smul.addr %s179, 8
          %s181 = scalar_lea.vmem [#allocation2], %s180
          %s183 = ssub.s32 128, 128
          %184 = vsyncadd %s178, %s183
          %s185 = smul.addr %s21, 128
          %s186 = scalar_lea.hbm %s0, %s185
          %s188 = sshll.u32 %s181, 4
          %s189 = int_to_ptr.vmem [resolvable:$true] %s188
          %191 = dma.hbm_to_vmem [thread:$0]  %s186, 128, %s189, %s178
        $region28: #{maxout_forward.1} parent=23 // pred_fallthru
          _
      $region24: #{maxout_forward.1} parent=5 // pred_fallthru
        _
      %p192 = scmp.le.s32.totalorder 1, %s13
      %p193 = scmp.lt.s32.totalorder %s13, 3
      %p194 = pnand %p192, %p193
      %p195 = pneg %p194
      // Predicated region
      $region29: #{maxout_forward.1} parent=5 // pred_check
        _
      $region30: #{maxout_forward.1} parent=5 // pred_check_branch
        %197 = sbr.rel (%p194) target = $region32
      $region31: #{maxout_forward.1} parent=5 // pred_region
        %s198 = ssub.s32 %s13, 1
        %s199 = sand.u32 %s38, 1
        %s200 = scalar_lea.sflag [#allocation3], %s199
        %s201 = sand.u32 %s38, 1
        %s202 = smul.addr %s201, 8
        %s203 = scalar_lea.vmem [#allocation2], %s202
        // Predicated region
        $region33: #{maxout_forward.1} parent=31 // pred_check
          %p204 = pneg %p51
        $region34: #{maxout_forward.1} parent=31 // pred_check_branch
          %206 = sbr.rel (%p204) target = $region36
        $region35: #{maxout_forward.1} parent=31 // pred_region
          %207 = dma.done %s200, 128
        $region36: #{maxout_forward.1} parent=31 // pred_fallthru
          _
        // Predicated region
        $region37: #{maxout_forward.1} parent=31 // pred_check
          %p208 = pneg %p77
        $region38: #{maxout_forward.1} parent=31 // pred_check_branch
          %210 = sbr.rel (%p208) target = $region40
        $region39: #{maxout_forward.1} parent=31 // pred_region
          %211 = dma.done [#allocation5], 2048
        $region40: #{maxout_forward.1} parent=31 // pred_fallthru
          _
        %s212 = sand.u32 %s38, 1
        %s213 = scalar_lea.sflag [#allocation3], %s212
        %s214 = sand.u32 %s38, 1
        %s215 = smul.addr %s214, 8
        %s216 = scalar_lea.vmem [#allocation2], %s215
        %p217 = pneg %p51
        %p218 = pneg %p48
        %p219 = pneg %p77
        %p220 = pneg %p74
        %s221 = smul.u32 4, %s22
        %p222 = scmp.lt.s32.totalorder %s221, 3
        %s223 = scalar_select %p222, %s221, 3
        %s224 = scalar_lea.vmem %s2, %s223
        %p225 = pneg %p103
        %p226 = pneg %p100
        %p227 = pneg %p131
        %p228 = pneg %p128
        %p229 = scmp.lt.s32.totalorder %s23, 1
        %s230 = scalar_select %p229, %s23, 1
        %p231 = scmp.lt.s32.totalorder %s22, 0
        %s232 = scalar_select %p231, %s22, 0
        %s233 = sadd.s32 %s232, %s230
        %s234 = smul.addr %s233, 8
        %s235 = scalar_lea.vmem %s3, %s234
        %s236 = smul.u32 4, %s22
        %s237 = smul.u32 4, %s22
        %p238 = scmp.lt.s32.totalorder %s237, 3
        %s239 = scalar_select %p238, %s237, 3
        %s240 = scalar_lea.vmem %s2, %s239
        %s241 = smul.u32 4, %s22
        %p242 = scmp.lt.s32.totalorder %s23, 1
        %s243 = scalar_select %p242, %s23, 1
        %p244 = scmp.lt.s32.totalorder %s22, 0
        %s245 = scalar_select %p244, %s22, 0
        %s246 = sadd.s32 %s245, %s243
        %s247 = smul.addr %s246, 8
        %s248 = scalar_lea.vmem %s3, %s247
        %v249 = vld [vmem:[%s203] sm:$0xff]
        %v250 = vld [vmem:[#allocation4] sm:$0xff]
        %v251 = vld [vmem:[#allocation4 + $0x8] sm:$0xff]
        %v252 = vld [vmem:[#allocation4 + $0x10] sm:$0xff]
        %v253 = vld [vmem:[#allocation4 + $0x18] sm:$0xff]
        %v254 = vld [vmem:[#allocation4 + $0x20] sm:$0xff]
        %v255 = vld [vmem:[#allocation4 + $0x28] sm:$0xff]
        %v256 = vld [vmem:[#allocation4 + $0x30] sm:$0xff]
        %v257 = vld [vmem:[#allocation4 + $0x38] sm:$0xff]
        %v258 = vld [vmem:[#allocation4 + $0x40] sm:$0xff]
        %v259 = vld [vmem:[#allocation4 + $0x48] sm:$0xff]
        %v260 = vld [vmem:[#allocation4 + $0x50] sm:$0xff]
        %v261 = vld [vmem:[#allocation4 + $0x58] sm:$0xff]
        %v262 = vld [vmem:[#allocation4 + $0x60] sm:$0xff]
        %v263 = vld [vmem:[#allocation4 + $0x68] sm:$0xff]
        %v264 = vld [vmem:[#allocation4 + $0x70] sm:$0xff]
        %v265 = vld [vmem:[#allocation4 + $0x78] sm:$0xff]
        %v266 = vld [vmem:[%s240] sm:$0xf]
        %v268 = vlaneseq
        %v269 = vshrl.u32 %v268, 7
        %v270 = vsub.s32 0, %v269
        %v271 = vrot.slane %v266, %v270
        %v272 = vlaneseq
        %v273 = vshrl.u32 %v272, 7
        %v274 = vsub.s32 1, %v273
        %v275 = vrot.slane %v266, %v274
        %v276 = vlaneseq
        %v277 = vshrl.u32 %v276, 7
        %v278 = vsub.s32 2, %v277
        %v279 = vrot.slane %v266, %v278
        %v280 = vlaneseq
        %v281 = vshrl.u32 %v280, 7
        %v282 = vsub.s32 3, %v281
        %v283 = vrot.slane %v266, %v282
        %vm288 = vcmask 261120
        %v290 = vsel %vm288, %v249, 0
        %292 = vmatprep.subr.mxu0 0.0
        %293 = vmatpush1.msra.mxu0 0.0
        %294 = vmatprep.subr.mxu0 0.0
        %295 = vmatpush1.msra.mxu0 0.0
        %296 = vmatprep.subr.mxu0 0.0
        %297 = vmatpush1.msra.mxu0 0.0
        %298 = vmatprep.subr.mxu0 0.0
        %299 = vmatpush1.msra.mxu0 0.0
        %300 = vmatprep.subr.mxu0 0.0
        %301 = vmatpush1.msra.mxu0 0.0
        %302 = vmatprep.subr.mxu0 0.0
        %303 = vmatpush1.msra.mxu0 0.0
        %304 = vmatprep.subr.mxu0 0.0
        %305 = vmatpush1.msra.mxu0 0.0
        %306 = vmatprep.subr.mxu0 0.0
        %307 = vmatpush1.msra.mxu0 0.0
        %308 = vmatprep.subr.mxu0 0.0
        %309 = vmatpush1.msra.mxu0 0.0
        %310 = vmatprep.subr.mxu0 0.0
        %311 = vmatpush1.msra.mxu0 0.0
        %312 = vmatprep.subr.mxu0 0.0
        %313 = vmatpush1.msra.mxu0 0.0
        %314 = vmatprep.subr.mxu0 0.0
        %315 = vmatpush1.msra.mxu0 0.0
        %316 = vmatprep.subr.mxu0 %v263
        %317 = vmatpush1.msra.mxu0 %v262
        %318 = vmatprep.subr.mxu0 %v259
        %319 = vmatpush1.msra.mxu0 %v258
        %320 = vmatprep.subr.mxu0 %v255
        %321 = vmatpush1.msra.mxu0 %v254
        %322 = vmatprep.subr.mxu0 %v251
        %323 = vmatpush1.msra.mxu0 %v250
        %324 = vmatprep.subr.mxu0 0.0
        %325 = vmatpush2.msra.mxu0 0.0
        %326 = vmatprep.subr.mxu0 0.0
        %327 = vmatpush2.msra.mxu0 0.0
        %328 = vmatprep.subr.mxu0 0.0
        %329 = vmatpush2.msra.mxu0 0.0
        %330 = vmatprep.subr.mxu0 0.0
        %331 = vmatpush2.msra.mxu0 0.0
        %332 = vmatprep.subr.mxu0 0.0
        %333 = vmatpush2.msra.mxu0 0.0
        %334 = vmatprep.subr.mxu0 0.0
        %335 = vmatpush2.msra.mxu0 0.0
        %336 = vmatprep.subr.mxu0 0.0
        %337 = vmatpush2.msra.mxu0 0.0
        %338 = vmatprep.subr.mxu0 0.0
        %339 = vmatpush2.msra.mxu0 0.0
        %340 = vmatprep.subr.mxu0 0.0
        %341 = vmatpush2.msra.mxu0 0.0
        %342 = vmatprep.subr.mxu0 0.0
        %343 = vmatpush2.msra.mxu0 0.0
        %344 = vmatprep.subr.mxu0 0.0
        %345 = vmatpush2.msra.mxu0 0.0
        %346 = vmatprep.subr.mxu0 0.0
        %347 = vmatpush2.msra.mxu0 0.0
        %348 = vmatprep.subr.mxu0 0.0
        %349 = vmatpush2.msra.mxu0 0.0
        %350 = vmatprep.subr.mxu0 0.0
        %351 = vmatpush2.msra.mxu0 0.0
        %352 = vmatprep.subr.mxu0 0.0
        %353 = vmatpush2.msra.mxu0 0.0
        %354 = vmatprep.subr.mxu0 0.0
        %355 = vmatpush2.msra.mxu0 0.0
        %356 = vmatprep.mubr.f32.mxu0 0.0
        %357 = vmatmul.mubr.f32.gmra.mxu0 %v290
        %v358 = vpop.f32.mrf.mxu0
        %v359 = vadd.f32 %v271, %v358
        %v360 = vpop.f32.mrf.mxu0
        %v361 = vadd.f32 %v275, %v360
        %362 = vdwg.mxu0
        %363 = vmatprep.subr.mxu0 0.0
        %364 = vmatpush1.msra.mxu0 0.0
        %365 = vmatprep.subr.mxu0 0.0
        %366 = vmatpush1.msra.mxu0 0.0
        %367 = vmatprep.subr.mxu0 0.0
        %368 = vmatpush1.msra.mxu0 0.0
        %369 = vmatprep.subr.mxu0 0.0
        %370 = vmatpush1.msra.mxu0 0.0
        %371 = vmatprep.subr.mxu0 0.0
        %372 = vmatpush1.msra.mxu0 0.0
        %373 = vmatprep.subr.mxu0 0.0
        %374 = vmatpush1.msra.mxu0 0.0
        %375 = vmatprep.subr.mxu0 0.0
        %376 = vmatpush1.msra.mxu0 0.0
        %377 = vmatprep.subr.mxu0 0.0
        %378 = vmatpush1.msra.mxu0 0.0
        %379 = vmatprep.subr.mxu0 0.0
        %380 = vmatpush1.msra.mxu0 0.0
        %381 = vmatprep.subr.mxu0 0.0
        %382 = vmatpush1.msra.mxu0 0.0
        %383 = vmatprep.subr.mxu0 0.0
        %384 = vmatpush1.msra.mxu0 0.0
        %385 = vmatprep.subr.mxu0 0.0
        %386 = vmatpush1.msra.mxu0 0.0
        %387 = vmatprep.subr.mxu0 %v265
        %388 = vmatpush1.msra.mxu0 %v264
        %389 = vmatprep.subr.mxu0 %v261
        %390 = vmatpush1.msra.mxu0 %v260
        %391 = vmatprep.subr.mxu0 %v257
        %392 = vmatpush1.msra.mxu0 %v256
        %393 = vmatprep.subr.mxu0 %v253
        %394 = vmatpush1.msra.mxu0 %v252
        %395 = vmatprep.subr.mxu0 0.0
        %396 = vmatpush2.msra.mxu0 0.0
        %397 = vmatprep.subr.mxu0 0.0
        %398 = vmatpush2.msra.mxu0 0.0
        %399 = vmatprep.subr.mxu0 0.0
        %400 = vmatpush2.msra.mxu0 0.0
        %401 = vmatprep.subr.mxu0 0.0
        %402 = vmatpush2.msra.mxu0 0.0
        %403 = vmatprep.subr.mxu0 0.0
        %404 = vmatpush2.msra.mxu0 0.0
        %405 = vmatprep.subr.mxu0 0.0
        %406 = vmatpush2.msra.mxu0 0.0
        %407 = vmatprep.subr.mxu0 0.0
        %408 = vmatpush2.msra.mxu0 0.0
        %409 = vmatprep.subr.mxu0 0.0
        %410 = vmatpush2.msra.mxu0 0.0
        %411 = vmatprep.subr.mxu0 0.0
        %412 = vmatpush2.msra.mxu0 0.0
        %413 = vmatprep.subr.mxu0 0.0
        %414 = vmatpush2.msra.mxu0 0.0
        %415 = vmatprep.subr.mxu0 0.0
        %416 = vmatpush2.msra.mxu0 0.0
        %417 = vmatprep.subr.mxu0 0.0
        %418 = vmatpush2.msra.mxu0 0.0
        %419 = vmatprep.subr.mxu0 0.0
        %420 = vmatpush2.msra.mxu0 0.0
        %421 = vmatprep.subr.mxu0 0.0
        %422 = vmatpush2.msra.mxu0 0.0
        %423 = vmatprep.subr.mxu0 0.0
        %424 = vmatpush2.msra.mxu0 0.0
        %425 = vmatprep.subr.mxu0 0.0
        %426 = vmatpush2.msra.mxu0 0.0
        %427 = vmatprep.mubr.f32.mxu0 0.0
        %428 = vmatmul.mubr.f32.gmra.mxu0 %v290
        %v429 = vpop.f32.mrf.mxu0
        %v430 = vadd.f32 %v279, %v429
        %v431 = vpop.f32.mrf.mxu0
        %v432 = vadd.f32 %v283, %v431
        %433 = vdwg.mxu0
        %v434 = vmax.f32 %v359, %v361
        %v435 = vmax.f32 %v434, %v430
        %v436 = vmax.f32 %v435, %v432
        %437 = vst [vmem:[%s248] sm:$0xff] %v436
        %p438 = scmp.lt.s32.totalorder %s23, 1
        %s439 = scalar_select %p438, %s23, 1
        %p440 = scmp.lt.s32.totalorder %s22, 0
        %s441 = scalar_select %p440, %s22, 0
        %s442 = sadd.s32 %s441, %s439
        %s443 = smul.addr %s442, 8
        %s444 = scalar_lea.vmem %s3, %s443
        // Predicated region
        $region41: #{maxout_forward.1} parent=31 // pred_check
          %p445 = pneg %p128
        $region42: #{maxout_forward.1} parent=31 // pred_check_branch
          %447 = sbr.rel (%p445) target = $region44
        $region43: #{maxout_forward.1} parent=31 // pred_region
          _
        $region44: #{maxout_forward.1} parent=31 // pred_fallthru
          _
      $region32: #{maxout_forward.1} parent=5 // pred_fallthru
        _
      %p448 = scmp.le.s32.totalorder 2, %s13
      // Predicated region
      $region45: #{maxout_forward.1} parent=5 // pred_check
        %p449 = pneg %p448
      $region46: #{maxout_forward.1} parent=5 // pred_check_branch
        %451 = sbr.rel (%p449) target = $region48
      $region47: #{maxout_forward.1} parent=5 // pred_region
        %s452 = ssub.s32 %s13, 2
        // Predicated region
        $region49: #{maxout_forward.1} parent=47 // pred_check
          %p453 = pneg %p134
        $region50: #{maxout_forward.1} parent=47 // pred_check_branch
          %455 = sbr.rel (%p453) target = $region52
        $region51: #{maxout_forward.1} parent=47 // pred_region
          %p456 = scmp.lt.s32.totalorder %s25, 1
          %s457 = scalar_select %p456, %s25, 1
          %p458 = scmp.lt.s32.totalorder %s24, 0
          %s459 = scalar_select %p458, %s24, 0
          %s460 = sadd.s32 %s459, %s457
          %s461 = smul.addr %s460, 8
          %s462 = scalar_lea.vmem %s3, %s461
        $region52: #{maxout_forward.1} parent=47 // pred_fallthru
          _
      $region48: #{maxout_forward.1} parent=5 // pred_fallthru
        _
    $region6: #{maxout_forward.1} parent=1 // loop_footer
      %s17 = sadd.s32 1, %s13
    $region7: #{maxout_forward.1} parent=1 // loop_footer_branch
      %12 = sbr.rel target = $region3
    $region8: #{maxout_forward.1} parent=1 // loop_exit
      _
    %463 = vsyncpa [#allocation3], 1
    %s464 = scalar_lea.sflag [#allocation3], 1
    %465 = vsyncpa %s464, 1
    %466 = vsyncpa [#allocation5], 1

</llo_original>
